<compile_context>
chip_gen: v7x
topology: tpu7x:2x2x1
jax: 0.10.0
libtpu: 0.0.40
codegen_flags: <defaults>
</compile_context>

<pallas_src>
import functools

import jax
import jax.numpy as jnp
from jax.experimental import pallas as pl
from jax.experimental.pallas import tpu as pltpu


def _round_up(x, m):
    return ((x + m - 1) // m) * m


def actor_critic_kernel(x_ref, w1_ref, w2_ref, out_ref, *, num_actions):
    x = x_ref[...]                                                     # [TB, K+1]

    # Fused first layer (critic || actor || const-1 column) + ReLU.
    h = jnp.dot(x, w1_ref[...], preferred_element_type=jnp.float32)   # [TB, 2H+1]
    h = jnp.maximum(h, 0.0)

    # Fused second layer (block-diagonal, bias row, zero-padded to 128 lanes).
    out = jnp.dot(h, w2_ref[...], preferred_element_type=jnp.float32)  # [TB, 128]

    # Numerically-stable softmax over the logit columns only.
    col = jax.lax.broadcasted_iota(jnp.int32, out.shape, dimension=1)
    is_logit = (col >= 1) & (col <= num_actions)
    masked = jnp.where(is_logit, out, -jnp.inf)
    m = jnp.max(masked, axis=-1, keepdims=True)
    e = jnp.exp(masked - m)                            # masked cols -> exp(-inf) = 0
    denom = jnp.sum(e, axis=-1, keepdims=True)
    inv = pl.reciprocal(denom, approx=True)            # EUP vrcp
    inv = inv * (2.0 - denom * inv)                    # one Newton step -> ~exact
    policy = e * inv

    # Single lane-dense store: [value | policy | zero padding].
    out_ref[...] = jnp.where(is_logit, policy, out)


@functools.partial(jax.jit, static_argnames=("num_actions",))
def actor_critic_forward(state, fused, num_actions):
    """state: [num_inputs] or [B, num_inputs] float32; fused: dict(W1, W2).

    Returns (value [B,1], policy [B, num_actions]); B=1 for a 1-D state
    (matches the PyTorch module's unsqueeze(0)).
    """
    x = state.astype(jnp.float32)
    if x.ndim == 1:
        x = x.reshape(1, -1)
    batch, num_inputs = x.shape
    k1 = num_inputs + 1                                # homogeneous column
    two_h1 = fused["W1"].shape[1]                      # 2H + 1
    out_cols = fused["W2"].shape[1]                    # lane-dense (>= 128)

    # Pick a batch tile: 128-row tiles when the batch is large, otherwise one
    # full (8-row-aligned) tile.  Padded rows are zeros and are sliced away.
    tb = 128
    if batch >= tb:
        b_pad = _round_up(batch, tb)
    else:
        b_pad = max(8, _round_up(batch, 8))
        tb = b_pad
    grid = (b_pad // tb,)

    # Build x' = [x | 1] padded to b_pad rows.
    xh = jnp.zeros((b_pad, k1), jnp.float32)
    xh = xh.at[:batch, :num_inputs].set(x)
    xh = xh.at[:, num_inputs].set(1.0)

    cost = pl.CostEstimate(
        flops=2 * b_pad * (k1 * two_h1 + two_h1 * out_cols),
        transcendentals=b_pad * (out_cols + 1),        # exp row + reciprocal
        bytes_accessed=4 * (b_pad * k1 + k1 * two_h1
                            + two_h1 * out_cols + b_pad * out_cols),
    )

    kernel = functools.partial(actor_critic_kernel, num_actions=num_actions)
    out = pl.pallas_call(
        kernel,
        out_shape=jax.ShapeDtypeStruct((b_pad, out_cols), jnp.float32),
        grid=grid,
        in_specs=[
            pl.BlockSpec((tb, k1), lambda i: (i, 0)),          # per-tile states
            pl.BlockSpec((k1, two_h1), lambda i: (0, 0)),      # fused W1 (resident)
            pl.BlockSpec((two_h1, out_cols), lambda i: (0, 0)),  # fused W2 (resident)
        ],
        out_specs=pl.BlockSpec((tb, out_cols), lambda i: (i, 0)),
        compiler_params=pltpu.CompilerParams(
            dimension_semantics=("parallel",)),                # v7x: both TCs
        cost_estimate=cost,
    )(xh, fused["W1"], fused["W2"])

    value = out[:batch, :1]
    policy = out[:batch, 1:1 + num_actions]
    return value, policy


def init_params(key, num_inputs, num_actions, hidden_size):
    """Deterministic init mimicking nn.Linear: U(-1/sqrt(fan_in), 1/sqrt(fan_in))."""
    ks = jax.random.split(key, 8)

    def linear(kw, kb, fan_in, fan_out):
        bound = 1.0 / jnp.sqrt(jnp.float32(fan_in))
        w = jax.random.uniform(kw, (fan_in, fan_out), jnp.float32, -bound, bound)
        b = jax.random.uniform(kb, (1, fan_out), jnp.float32, -bound, bound)
        return w, b

    w1c, b1c = linear(ks[0], ks[1], num_inputs, hidden_size)
    w2c, b2c = linear(ks[2], ks[3], hidden_size, 1)
    w1a, b1a = linear(ks[4], ks[5], num_inputs, hidden_size)
    w2a, b2a = linear(ks[6], ks[7], hidden_size, num_actions)
    return dict(w1c=w1c, b1c=b1c, w2c=w2c, b2c=b2c,
                w1a=w1a, b1a=b1a, w2a=w2a, b2a=b2a)


def fuse_params(p, lane_pad=128):
    """One-time host-side fusion: 4 Linears + 4 biases -> 2 weight matrices."""
    num_inputs, hidden = p["w1c"].shape
    num_actions = p["w2a"].shape[1]
    two_h = 2 * hidden
    out_cols = _round_up(1 + num_actions, lane_pad)    # lane-dense output

    # W1' : [num_inputs+1, 2H+1]  (bias row folded in; last col -> constant 1)
    W1 = jnp.zeros((num_inputs + 1, two_h + 1), jnp.float32)
    W1 = W1.at[:num_inputs, :hidden].set(p["w1c"])
    W1 = W1.at[:num_inputs, hidden:two_h].set(p["w1a"])
    W1 = W1.at[num_inputs, :hidden].set(p["b1c"][0])
    W1 = W1.at[num_inputs, hidden:two_h].set(p["b1a"][0])
    W1 = W1.at[num_inputs, two_h].set(1.0)

    # W2' : [2H+1, 128]  block-diagonal (value | logits) + bias row, zero-padded.
    # TODO(synk): if 2H or num_actions grow past ~256, split back into two dots
    # sharing h instead of a half-zero block-diagonal W2.
    W2 = jnp.zeros((two_h + 1, out_cols), jnp.float32)
    W2 = W2.at[:hidden, 0:1].set(p["w2c"])
    W2 = W2.at[hidden:two_h, 1:1 + num_actions].set(p["w2a"])
    W2 = W2.at[two_h, 0:1].set(p["b2c"][0])
    W2 = W2.at[two_h, 1:1 + num_actions].set(p["b2a"][0])
    return dict(W1=W1, W2=W2)


def reference_forward(states, params):
    x = states.astype(jnp.float32)
    if x.ndim == 1:
        x = x.reshape(1, -1)
    h_c = jnp.maximum(x @ params["w1c"] + params["b1c"], 0.0)
    value = h_c @ params["w2c"] + params["b2c"]
    h_a = jnp.maximum(x @ params["w1a"] + params["b1a"], 0.0)
    logits = h_a @ params["w2a"] + params["b2a"]
    return value, jax.nn.softmax(logits, axis=1)


if __name__ == "__main__":
    num_inputs, num_actions, hidden_size = 16, 8, 32
    batch = 128                                        # rollout of states per call

    key = jax.random.PRNGKey(0)
    k_params, k_state = jax.random.split(key)
    params = init_params(k_params, num_inputs, num_actions, hidden_size)
    fused = fuse_params(params)
    states = jax.random.normal(k_state, (batch, num_inputs), dtype=jnp.float32)

    # Batched forward (whole rollout in one pallas_call).
    value, policy = actor_critic_forward(states, fused, num_actions)
    value, policy = jax.block_until_ready((value, policy))

    v_ref, p_ref = reference_forward(states, params)
    assert value.shape == (batch, 1) and policy.shape == (batch, num_actions)
    assert jnp.allclose(value, v_ref, atol=1e-5, rtol=1e-5)
    assert jnp.allclose(policy, p_ref, atol=1e-4, rtol=1e-4)
    assert jnp.allclose(jnp.sum(policy, axis=1), 1.0, atol=1e-4)

    # Original module semantics: single state, unsqueeze(0) -> [1, ...] outputs.
    v1, p1 = actor_critic_forward(states[0], fused, num_actions)
    v1, p1 = jax.block_until_ready((v1, p1))
    assert v1.shape == (1, 1) and p1.shape == (1, num_actions)
    assert jnp.allclose(v1, v_ref[:1], atol=1e-5, rtol=1e-5)
    assert jnp.allclose(p1, p_ref[:1], atol=1e-4, rtol=1e-4)

    print("KERNEL_OK")
</pallas_src>

<mosaic_0001>
module attributes {stable_mosaic.version = 11 : i64} {
  func.func @actor_critic_kernel(%arg0: i32, %arg1: memref<128x17xf32, #tpu.memory_space<vmem>>, %arg2: memref<17x65xf32, #tpu.memory_space<vmem>>, %arg3: memref<65x128xf32, #tpu.memory_space<vmem>>, %arg4: memref<128x128xf32, #tpu.memory_space<vmem>>) attributes {dimension_semantics = [#tpu.dimension_semantics<parallel>], iteration_bounds = array<i64: 1>, scalar_prefetch = 0 : i64, scratch_operands = 0 : i64, tpu.core_type = #tpu.core_type<tc>, window_params = [{transform_indices = @transform_0, window_bounds = array<i64: 128, 17>}, {pipeline_mode = #tpu.pipeline_mode<synchronous>, transform_indices = @transform_1, window_bounds = array<i64: 17, 65>}, {pipeline_mode = #tpu.pipeline_mode<synchronous>, transform_indices = @transform_2, window_bounds = array<i64: 65, 128>}, {transform_indices = @transform_3, window_bounds = array<i64: 128, 128>}]} {
    %c0 = arith.constant 0 : index
    %c0_0 = arith.constant 0 : index
    %0 = vector.load %arg1[%c0, %c0_0] : memref<128x17xf32, #tpu.memory_space<vmem>>, vector<128x17xf32>
    %c0_1 = arith.constant 0 : index
    %c0_2 = arith.constant 0 : index
    %1 = vector.load %arg2[%c0_1, %c0_2] : memref<17x65xf32, #tpu.memory_space<vmem>>, vector<17x65xf32>
    %cst = arith.constant dense<0.000000e+00> : vector<128x65xf32>
    %2 = tpu.matmul %0, %1, %cst {dimension_numbers = #tpu.dot_dimension_numbers<[1], [0], [0], [1], [0, 0, 1, 1], [], []>} : vector<128x17xf32>, vector<17x65xf32>, vector<128x65xf32> -> vector<128x65xf32>
    %cst_3 = arith.constant 0.000000e+00 : f32
    %3 = vector.broadcast %cst_3 : f32 to vector<128x65xf32>
    %4 = arith.maximumf %2, %3 : vector<128x65xf32>
    %c0_4 = arith.constant 0 : index
    %c0_5 = arith.constant 0 : index
    %5 = vector.load %arg3[%c0_4, %c0_5] : memref<65x128xf32, #tpu.memory_space<vmem>>, vector<65x128xf32>
    %cst_6 = arith.constant dense<0.000000e+00> : vector<128x128xf32>
    %6 = tpu.matmul %4, %5, %cst_6 {dimension_numbers = #tpu.dot_dimension_numbers<[1], [0], [0], [1], [0, 0, 1, 1], [], []>} : vector<128x65xf32>, vector<65x128xf32>, vector<128x128xf32> -> vector<128x128xf32>
    %7 = tpu.iota {dimensions = array<i32: 1>} : vector<128x128xi32>
    %c1_i32 = arith.constant 1 : i32
    %8 = vector.broadcast %c1_i32 : i32 to vector<128x128xi32>
    %9 = arith.cmpi sge, %7, %8 : vector<128x128xi32>
    %c8_i32 = arith.constant 8 : i32
    %10 = vector.broadcast %c8_i32 : i32 to vector<128x128xi32>
    %11 = arith.cmpi sle, %7, %10 : vector<128x128xi32>
    %12 = arith.andi %9, %11 : vector<128x128xi1>
    %cst_7 = arith.constant 0xFF800000 : f32
    %13 = vector.broadcast %cst_7 : f32 to vector<128x128xf32>
    %14 = arith.select %12, %6, %13 : vector<128x128xi1>, vector<128x128xf32>
    %cst_8 = arith.constant dense<0xFF800000> : vector<128xf32>
    %15 = vector.multi_reduction <maximumf>, %14, %cst_8 [1] : vector<128x128xf32> to vector<128xf32>
    %16 = vector.shape_cast %15 : vector<128xf32> to vector<128x1xf32>
    %17 = vector.broadcast %16 : vector<128x1xf32> to vector<128x128xf32>
    %18 = arith.subf %14, %17 : vector<128x128xf32>
    %19 = math.exp %18 : vector<128x128xf32>
    %cst_9 = arith.constant dense<0.000000e+00> : vector<128xf32>
    %20 = vector.multi_reduction <add>, %19, %cst_9 [1] : vector<128x128xf32> to vector<128xf32>
    %21 = vector.shape_cast %20 : vector<128xf32> to vector<128x1xf32>
    %22 = tpu.reciprocal %21 {approx = true} : vector<128x1xf32> -> vector<128x1xf32>
    %23 = arith.mulf %21, %22 : vector<128x1xf32>
    %cst_10 = arith.constant 2.000000e+00 : f32
    %24 = vector.broadcast %cst_10 : f32 to vector<128x1xf32>
    %25 = arith.subf %24, %23 : vector<128x1xf32>
    %26 = arith.mulf %22, %25 : vector<128x1xf32>
    %27 = vector.broadcast %26 : vector<128x1xf32> to vector<128x128xf32>
    %28 = arith.mulf %19, %27 : vector<128x128xf32>
    %29 = arith.select %12, %28, %6 : vector<128x128xi1>, vector<128x128xf32>
    %c0_11 = arith.constant 0 : index
    %c0_12 = arith.constant 0 : index
    %30 = vector.load %arg4[%c0_11, %c0_12] : memref<128x128xf32, #tpu.memory_space<vmem>>, vector<128x128xf32>
    tpu.vector_store %arg4[%c0_11, %c0_12], %29 {strides = array<i32>} : memref<128x128xf32, #tpu.memory_space<vmem>>, vector<128x128xf32>,
    return
  }
  func.func @transform_0(%arg0: i32) -> (i32, i32) {
    %c0_i32 = arith.constant 0 : i32
    %c0_i32_0 = arith.constant 0 : i32
    return %arg0, %c0_i32 : i32, i32
  }
  func.func @transform_1(%arg0: i32) -> (i32, i32) {
    %c0_i32 = arith.constant 0 : i32
    %c0_i32_0 = arith.constant 0 : i32
    %c0_i32_1 = arith.constant 0 : i32
    return %c0_i32, %c0_i32_0 : i32, i32
  }
  func.func @transform_2(%arg0: i32) -> (i32, i32) {
    %c0_i32 = arith.constant 0 : i32
    %c0_i32_0 = arith.constant 0 : i32
    %c0_i32_1 = arith.constant 0 : i32
    return %c0_i32, %c0_i32_0 : i32, i32
  }
  func.func @transform_3(%arg0: i32) -> (i32, i32) {
    %c0_i32 = arith.constant 0 : i32
    %c0_i32_0 = arith.constant 0 : i32
    return %arg0, %c0_i32 : i32, i32
  }
}

</mosaic_0001>

<llo_original>
// kernel: actor_critic_forward.1
$region0: #{actor_critic_forward.1}
  #allocation0 [shape = 'u32[]', space=smem, size = 0x4, offset = 0x4, fixed_abs, tag = 'smem constant byte address 0x4 - core index']
  #allocation1 [shape = 'u32[144,128]{1,0:T(1,128)}', space=vmem, size = 0x12000, scoped, tag = 'internal scratch']
  %s0 = inlined_call_operand.vmem [shape: f32[128,17], index: 0, kind: input, shape index: {}]
  %s1 = inlined_call_operand.vmem [shape: f32[17,65], index: 1, kind: input, shape index: {}]
  %s2 = inlined_call_operand.vmem [shape: f32[65,128], index: 2, kind: input, shape index: {}]
  %s3 = inlined_call_operand.vmem [shape: f32[128,128], index: 3, kind: output, shape index: {}]
  %s4 = sld [smem:[#allocation0]]
  $region22: #{actor_critic_forward.1} parent=0
    _
  %s6 = ssub.s32 1, %s4
  %s7 = scalar_select 0, %s6, %s4
  // Predicated region
  $region2: #{actor_critic_forward.1} parent=0 // pred_check
    _
  $region3: #{actor_critic_forward.1} parent=0 // pred_check_branch
    %9 = sbr.rel (0) target = $region5
  $region4: #{actor_critic_forward.1} parent=0 // pred_region
    _
  $region5: #{actor_critic_forward.1} parent=0 // pred_fallthru
    _
  // Predicated region
  $region6: #{actor_critic_forward.1} parent=0 // pred_check
    _
  $region7: #{actor_critic_forward.1} parent=0 // pred_check_branch
    %11 = sbr.rel (0) target = $region9
  $region8: #{actor_critic_forward.1} parent=0 // pred_region
    _
  $region9: #{actor_critic_forward.1} parent=0 // pred_fallthru
    _
  // Predicated region
  $region10: #{actor_critic_forward.1} parent=0 // pred_check
    _
  $region11: #{actor_critic_forward.1} parent=0 // pred_check_branch
    %13 = sbr.rel (0) target = $region13
  $region12: #{actor_critic_forward.1} parent=0 // pred_region
    _
  $region13: #{actor_critic_forward.1} parent=0 // pred_fallthru
    _
  %v14 = vld [vmem:[%s0] sm:$0xff]
  %v15 = vld [vmem:[%s0 + $0x8] sm:$0xff]
  %v16 = vld [vmem:[%s0 + $0x10] sm:$0xff]
  %v17 = vld [vmem:[%s0 + $0x18] sm:$0xff]
  %v18 = vld [vmem:[%s0 + $0x20] sm:$0xff]
  %v19 = vld [vmem:[%s0 + $0x28] sm:$0xff]
  %v20 = vld [vmem:[%s0 + $0x30] sm:$0xff]
  %v21 = vld [vmem:[%s0 + $0x38] sm:$0xff]
  %v22 = vld [vmem:[%s0 + $0x40] sm:$0xff]
  %v23 = vld [vmem:[%s0 + $0x48] sm:$0xff]
  %v24 = vld [vmem:[%s0 + $0x50] sm:$0xff]
  %v25 = vld [vmem:[%s0 + $0x58] sm:$0xff]
  %v26 = vld [vmem:[%s0 + $0x60] sm:$0xff]
  %v27 = vld [vmem:[%s0 + $0x68] sm:$0xff]
  %v28 = vld [vmem:[%s0 + $0x70] sm:$0xff]
  %v29 = vld [vmem:[%s0 + $0x78] sm:$0xff]
  %v30 = vld [vmem:[%s1] sm:$0xff]
  %v31 = vld [vmem:[%s1 + $0x8] sm:$0xff]
  %v32 = vld [vmem:[%s1 + $0x10] sm:$0x1]
  %vm33 = vcmask 138240
  %v35 = vsel %vm33, %v14, 0
  %v38 = vsel %vm33, %v15, 0
  %v41 = vsel %vm33, %v16, 0
  %v44 = vsel %vm33, %v17, 0
  %v47 = vsel %vm33, %v18, 0
  %v50 = vsel %vm33, %v19, 0
  %v53 = vsel %vm33, %v20, 0
  %v56 = vsel %vm33, %v21, 0
  %v59 = vsel %vm33, %v22, 0
  %v62 = vsel %vm33, %v23, 0
  %v65 = vsel %vm33, %v24, 0
  %v68 = vsel %vm33, %v25, 0
  %v71 = vsel %vm33, %v26, 0
  %v74 = vsel %vm33, %v27, 0
  %v77 = vsel %vm33, %v28, 0
  %v80 = vsel %vm33, %v29, 0
  %vm82 = vcmask 1040384
  %v84 = vsel %vm82, %v32, 0
  %86 = vmatprep.subr.mxu0 0.0
  %87 = vmatpush1.msra.mxu0 %v30
  %88 = vmatprep.subr.mxu0 0.0
  %89 = vmatpush1.msra.mxu0 %v31
  %90 = vmatprep.subr.mxu0 0.0
  %91 = vmatpush1.msra.mxu0 %v84
  %92 = vmatprep.subr.mxu0 0.0
  %93 = vmatpush1.msra.mxu0 0.0
  %94 = vmatprep.subr.mxu0 0.0
  %95 = vmatpush1.msra.mxu0 0.0
  %96 = vmatprep.subr.mxu0 0.0
  %97 = vmatpush1.msra.mxu0 0.0
  %98 = vmatprep.subr.mxu0 0.0
  %99 = vmatpush1.msra.mxu0 0.0
  %100 = vmatprep.subr.mxu0 0.0
  %101 = vmatpush1.msra.mxu0 0.0
  %102 = vmatprep.subr.mxu0 0.0
  %103 = vmatpush1.msra.mxu0 0.0
  %104 = vmatprep.subr.mxu0 0.0
  %105 = vmatpush1.msra.mxu0 0.0
  %106 = vmatprep.subr.mxu0 0.0
  %107 = vmatpush1.msra.mxu0 0.0
  %108 = vmatprep.subr.mxu0 0.0
  %109 = vmatpush1.msra.mxu0 0.0
  %110 = vmatprep.subr.mxu0 0.0
  %111 = vmatpush1.msra.mxu0 0.0
  %112 = vmatprep.subr.mxu0 0.0
  %113 = vmatpush1.msra.mxu0 0.0
  %114 = vmatprep.subr.mxu0 0.0
  %115 = vmatpush1.msra.mxu0 0.0
  %116 = vmatprep.subr.mxu0 0.0
  %117 = vmatpush1.msra.mxu0 0.0
  %118 = vmatprep.subr.mxu0 0.0
  %119 = vmatpush1.msra.mxu0 0.0
  %120 = vmatprep.subr.mxu0 0.0
  %121 = vmatpush1.msra.mxu0 0.0
  %122 = vmatprep.subr.mxu0 0.0
  %123 = vmatpush1.msra.mxu0 0.0
  %124 = vmatprep.subr.mxu0 0.0
  %125 = vmatpush1.msra.mxu0 0.0
  %126 = vmatprep.subr.mxu0 0.0
  %127 = vmatpush1.msra.mxu0 0.0
  %128 = vmatprep.subr.mxu0 0.0
  %129 = vmatpush1.msra.mxu0 0.0
  %130 = vmatprep.subr.mxu0 0.0
  %131 = vmatpush1.msra.mxu0 0.0
  %132 = vmatprep.subr.mxu0 0.0
  %133 = vmatpush1.msra.mxu0 0.0
  %134 = vmatprep.subr.mxu0 0.0
  %135 = vmatpush1.msra.mxu0 0.0
  %136 = vmatprep.subr.mxu0 0.0
  %137 = vmatpush1.msra.mxu0 0.0
  %138 = vmatprep.subr.mxu0 0.0
  %139 = vmatpush1.msra.mxu0 0.0
  %140 = vmatprep.subr.mxu0 0.0
  %141 = vmatpush1.msra.mxu0 0.0
  %142 = vmatprep.subr.mxu0 0.0
  %143 = vmatpush1.msra.mxu0 0.0
  %144 = vmatprep.subr.mxu0 0.0
  %145 = vmatpush1.msra.mxu0 0.0
  %146 = vmatprep.subr.mxu0 0.0
  %147 = vmatpush1.msra.mxu0 0.0
  %148 = vmatprep.subr.mxu0 0.0
  %149 = vmatpush1.msra.mxu0 0.0
  %150 = vmatprep.mubr.f32.mxu0 0.0
  %151 = vmatmul.mubr.f32.gmra.mrb[0].mxu0 %v35
  %v152 = vpop.f32.mrb[0].mxu0
  %v153 = vadd.f32 0.0, %v152
  %v154 = vpop.f32.mrb[0].mxu0
  %155 = vmatprep.mubr.f32.mxu0 0.0
  %156 = vmatmul.mubr.f32.gmra.mrb[0].mxu0 %v38
  %v157 = vpop.f32.mrb[0].mxu0
  %v158 = vadd.f32 0.0, %v157
  %v159 = vpop.f32.mrb[0].mxu0
  %160 = vmatprep.mubr.f32.mxu0 0.0
  %161 = vmatmul.mubr.f32.gmra.mrb[0].mxu0 %v41
  %v162 = vpop.f32.mrb[0].mxu0
  %v163 = vadd.f32 0.0, %v162
  %v164 = vpop.f32.mrb[0].mxu0
  %165 = vmatprep.mubr.f32.mxu0 0.0
  %166 = vmatmul.mubr.f32.gmra.mrb[0].mxu0 %v44
  %v167 = vpop.f32.mrb[0].mxu0
  %v168 = vadd.f32 0.0, %v167
  %v169 = vpop.f32.mrb[0].mxu0
  %170 = vmatprep.mubr.f32.mxu0 0.0
  %171 = vmatmul.mubr.f32.gmra.mrb[0].mxu0 %v47
  %v172 = vpop.f32.mrb[0].mxu0
  %v173 = vadd.f32 0.0, %v172
  %v174 = vpop.f32.mrb[0].mxu0
  %175 = vmatprep.mubr.f32.mxu0 0.0
  %176 = vmatmul.mubr.f32.gmra.mrb[0].mxu0 %v50
  %v177 = vpop.f32.mrb[0].mxu0
  %v178 = vadd.f32 0.0, %v177
  %v179 = vpop.f32.mrb[0].mxu0
  %180 = vmatprep.mubr.f32.mxu0 0.0
  %181 = vmatmul.mubr.f32.gmra.mrb[0].mxu0 %v53
  %v182 = vpop.f32.mrb[0].mxu0
  %v183 = vadd.f32 0.0, %v182
  %v184 = vpop.f32.mrb[0].mxu0
  %185 = vmatprep.mubr.f32.mxu0 0.0
  %186 = vmatmul.mubr.f32.gmra.mrb[0].mxu0 %v56
  %v187 = vpop.f32.mrb[0].mxu0
  %v188 = vadd.f32 0.0, %v187
  %v189 = vpop.f32.mrb[0].mxu0
  %190 = vmatprep.mubr.f32.mxu0 0.0
  %191 = vmatmul.mubr.f32.gmra.mrb[0].mxu0 %v59
  %v192 = vpop.f32.mrb[0].mxu0
  %v193 = vadd.f32 0.0, %v192
  %v194 = vpop.f32.mrb[0].mxu0
  %195 = vmatprep.mubr.f32.mxu0 0.0
  %196 = vmatmul.mubr.f32.gmra.mrb[0].mxu0 %v62
  %v197 = vpop.f32.mrb[0].mxu0
  %v198 = vadd.f32 0.0, %v197
  %v199 = vpop.f32.mrb[0].mxu0
  %200 = vmatprep.mubr.f32.mxu0 0.0
  %201 = vmatmul.mubr.f32.gmra.mrb[0].mxu0 %v65
  %v202 = vpop.f32.mrb[0].mxu0
  %v203 = vadd.f32 0.0, %v202
  %v204 = vpop.f32.mrb[0].mxu0
  %205 = vmatprep.mubr.f32.mxu0 0.0
  %206 = vmatmul.mubr.f32.gmra.mrb[0].mxu0 %v68
  %v207 = vpop.f32.mrb[0].mxu0
  %v208 = vadd.f32 0.0, %v207
  %v209 = vpop.f32.mrb[0].mxu0
  %210 = vmatprep.mubr.f32.mxu0 0.0
  %211 = vmatmul.mubr.f32.gmra.mrb[0].mxu0 %v71
  %v212 = vpop.f32.mrb[0].mxu0
  %v213 = vadd.f32 0.0, %v212
  %v214 = vpop.f32.mrb[0].mxu0
  %215 = vmatprep.mubr.f32.mxu0 0.0
  %216 = vmatmul.mubr.f32.gmra.mrb[0].mxu0 %v74
  %v217 = vpop.f32.mrb[0].mxu0
  %v218 = vadd.f32 0.0, %v217
  %v219 = vpop.f32.mrb[0].mxu0
  %220 = vmatprep.mubr.f32.mxu0 0.0
  %221 = vmatmul.mubr.f32.gmra.mrb[0].mxu0 %v77
  %v222 = vpop.f32.mrb[0].mxu0
  %v223 = vadd.f32 0.0, %v222
  %v224 = vpop.f32.mrb[0].mxu0
  %225 = vmatprep.mubr.f32.mxu0 0.0
  %226 = vmatmul.mubr.f32.gmra.mrb[0].mxu0 %v80
  %v227 = vpop.f32.mrb[0].mxu0
  %v228 = vadd.f32 0.0, %v227
  %v229 = vpop.f32.mrb[0].mxu0
  %230 = vdwg.mxu0
  %v231 = vmax.f32 %v153, 0.0
  %v232 = vmax.f32 %v158, 0.0
  %v233 = vmax.f32 %v163, 0.0
  %v234 = vmax.f32 %v168, 0.0
  %v235 = vmax.f32 %v173, 0.0
  %v236 = vmax.f32 %v178, 0.0
  %v237 = vmax.f32 %v183, 0.0
  %v238 = vmax.f32 %v188, 0.0
  %v239 = vmax.f32 %v193, 0.0
  %v240 = vmax.f32 %v198, 0.0
  %v241 = vmax.f32 %v203, 0.0
  %v242 = vmax.f32 %v208, 0.0
  %v243 = vmax.f32 %v213, 0.0
  %v244 = vmax.f32 %v218, 0.0
  %v245 = vmax.f32 %v223, 0.0
  %v246 = vmax.f32 %v228, 0.0
  %v247 = vld [vmem:[%s2] sm:$0xff]
  %v248 = vld [vmem:[%s2 + $0x8] sm:$0xff]
  %v249 = vld [vmem:[%s2 + $0x10] sm:$0xff]
  %v250 = vld [vmem:[%s2 + $0x18] sm:$0xff]
  %v251 = vld [vmem:[%s2 + $0x20] sm:$0xff]
  %v252 = vld [vmem:[%s2 + $0x28] sm:$0xff]
  %v253 = vld [vmem:[%s2 + $0x30] sm:$0xff]
  %v254 = vld [vmem:[%s2 + $0x38] sm:$0xff]
  %v255 = vld [vmem:[%s2 + $0x40] sm:$0x1]
  %vm256 = vcmask 531456
  %v258 = vsel %vm256, %v231, 0
  %v261 = vsel %vm256, %v232, 0
  %v264 = vsel %vm256, %v233, 0
  %v267 = vsel %vm256, %v234, 0
  %v270 = vsel %vm256, %v235, 0
  %v273 = vsel %vm256, %v236, 0
  %v276 = vsel %vm256, %v237, 0
  %v279 = vsel %vm256, %v238, 0
  %v282 = vsel %vm256, %v239, 0
  %v285 = vsel %vm256, %v240, 0
  %v288 = vsel %vm256, %v241, 0
  %v291 = vsel %vm256, %v242, 0
  %v294 = vsel %vm256, %v243, 0
  %v297 = vsel %vm256, %v244, 0
  %v300 = vsel %vm256, %v245, 0
  %v303 = vsel %vm256, %v246, 0
  %v306 = vsel %vm82, %v255, 0
  %308 = vmatprep.subr.mxu0 0.0
  %309 = vmatpush1.msra.mxu0 %v247
  %310 = vmatprep.subr.mxu0 0.0
  %311 = vmatpush1.msra.mxu0 %v248
  %312 = vmatprep.subr.mxu0 0.0
  %313 = vmatpush1.msra.mxu0 %v249
  %314 = vmatprep.subr.mxu0 0.0
  %315 = vmatpush1.msra.mxu0 %v250
  %316 = vmatprep.subr.mxu0 0.0
  %317 = vmatpush1.msra.mxu0 %v251
  %318 = vmatprep.subr.mxu0 0.0
  %319 = vmatpush1.msra.mxu0 %v252
  %320 = vmatprep.subr.mxu0 0.0
  %321 = vmatpush1.msra.mxu0 %v253
  %322 = vmatprep.subr.mxu0 0.0
  %323 = vmatpush1.msra.mxu0 %v254
  %324 = vmatprep.subr.mxu0 0.0
  %325 = vmatpush1.msra.mxu0 %v306
  %326 = vmatprep.subr.mxu0 0.0
  %327 = vmatpush1.msra.mxu0 0.0
  %328 = vmatprep.subr.mxu0 0.0
  %329 = vmatpush1.msra.mxu0 0.0
  %330 = vmatprep.subr.mxu0 0.0
  %331 = vmatpush1.msra.mxu0 0.0
  %332 = vmatprep.subr.mxu0 0.0
  %333 = vmatpush1.msra.mxu0 0.0
  %334 = vmatprep.subr.mxu0 0.0
  %335 = vmatpush1.msra.mxu0 0.0
  %336 = vmatprep.subr.mxu0 0.0
  %337 = vmatpush1.msra.mxu0 0.0
  %338 = vmatprep.subr.mxu0 0.0
  %339 = vmatpush1.msra.mxu0 0.0
  %340 = vmatprep.subr.mxu0 0.0
  %341 = vmatpush1.msra.mxu0 0.0
  %342 = vmatprep.subr.mxu0 0.0
  %343 = vmatpush1.msra.mxu0 0.0
  %344 = vmatprep.subr.mxu0 0.0
  %345 = vmatpush1.msra.mxu0 0.0
  %346 = vmatprep.subr.mxu0 0.0
  %347 = vmatpush1.msra.mxu0 0.0
  %348 = vmatprep.subr.mxu0 0.0
  %349 = vmatpush1.msra.mxu0 0.0
  %350 = vmatprep.subr.mxu0 0.0
  %351 = vmatpush1.msra.mxu0 0.0
  %352 = vmatprep.subr.mxu0 0.0
  %353 = vmatpush1.msra.mxu0 0.0
  %354 = vmatprep.subr.mxu0 0.0
  %355 = vmatpush1.msra.mxu0 0.0
  %356 = vmatprep.subr.mxu0 0.0
  %357 = vmatpush1.msra.mxu0 0.0
  %358 = vmatprep.subr.mxu0 0.0
  %359 = vmatpush1.msra.mxu0 0.0
  %360 = vmatprep.subr.mxu0 0.0
  %361 = vmatpush1.msra.mxu0 0.0
  %362 = vmatprep.subr.mxu0 0.0
  %363 = vmatpush1.msra.mxu0 0.0
  %364 = vmatprep.subr.mxu0 0.0
  %365 = vmatpush1.msra.mxu0 0.0
  %366 = vmatprep.subr.mxu0 0.0
  %367 = vmatpush1.msra.mxu0 0.0
  %368 = vmatprep.subr.mxu0 0.0
  %369 = vmatpush1.msra.mxu0 0.0
  %370 = vmatprep.subr.mxu0 0.0
  %371 = vmatpush1.msra.mxu0 0.0
  %372 = vmatprep.mubr.f32.mxu0 0.0
  %373 = vmatmul.mubr.f32.gmra.mrb[0].mxu0 %v258
  %v374 = vpop.f32.mrb[0].mxu0
  %v375 = vadd.f32 0.0, %v374
  %v376 = vpop.f32.mrb[0].mxu0
  %377 = vmatprep.mubr.f32.mxu0 0.0
  %378 = vmatmul.mubr.f32.gmra.mrb[0].mxu0 %v261
  %v379 = vpop.f32.mrb[0].mxu0
  %v380 = vadd.f32 0.0, %v379
  %v381 = vpop.f32.mrb[0].mxu0
  %382 = vmatprep.mubr.f32.mxu0 0.0
  %383 = vmatmul.mubr.f32.gmra.mrb[0].mxu0 %v264
  %v384 = vpop.f32.mrb[0].mxu0
  %v385 = vadd.f32 0.0, %v384
  %v386 = vpop.f32.mrb[0].mxu0
  %387 = vmatprep.mubr.f32.mxu0 0.0
  %388 = vmatmul.mubr.f32.gmra.mrb[0].mxu0 %v267
  %v389 = vpop.f32.mrb[0].mxu0
  %v390 = vadd.f32 0.0, %v389
  %v391 = vpop.f32.mrb[0].mxu0
  %392 = vmatprep.mubr.f32.mxu0 0.0
  %393 = vmatmul.mubr.f32.gmra.mrb[0].mxu0 %v270
  %v394 = vpop.f32.mrb[0].mxu0
  %v395 = vadd.f32 0.0, %v394
  %v396 = vpop.f32.mrb[0].mxu0
  %397 = vmatprep.mubr.f32.mxu0 0.0
  %398 = vmatmul.mubr.f32.gmra.mrb[0].mxu0 %v273
  %v399 = vpop.f32.mrb[0].mxu0
  %v400 = vadd.f32 0.0, %v399
  %v401 = vpop.f32.mrb[0].mxu0
  %402 = vmatprep.mubr.f32.mxu0 0.0
  %403 = vmatmul.mubr.f32.gmra.mrb[0].mxu0 %v276
  %v404 = vpop.f32.mrb[0].mxu0
  %v405 = vadd.f32 0.0, %v404
  %v406 = vpop.f32.mrb[0].mxu0
  %407 = vmatprep.mubr.f32.mxu0 0.0
  %408 = vmatmul.mubr.f32.gmra.mrb[0].mxu0 %v279
  %v409 = vpop.f32.mrb[0].mxu0
  %v410 = vadd.f32 0.0, %v409
  %v411 = vpop.f32.mrb[0].mxu0
  %412 = vmatprep.mubr.f32.mxu0 0.0
  %413 = vmatmul.mubr.f32.gmra.mrb[0].mxu0 %v282
  %v414 = vpop.f32.mrb[0].mxu0
  %v415 = vadd.f32 0.0, %v414
  %v416 = vpop.f32.mrb[0].mxu0
  %417 = vmatprep.mubr.f32.mxu0 0.0
  %418 = vmatmul.mubr.f32.gmra.mrb[0].mxu0 %v285
  %v419 = vpop.f32.mrb[0].mxu0
  %v420 = vadd.f32 0.0, %v419
  %v421 = vpop.f32.mrb[0].mxu0
  %422 = vmatprep.mubr.f32.mxu0 0.0
  %423 = vmatmul.mubr.f32.gmra.mrb[0].mxu0 %v288
  %v424 = vpop.f32.mrb[0].mxu0
  %v425 = vadd.f32 0.0, %v424
  %v426 = vpop.f32.mrb[0].mxu0
  %427 = vmatprep.mubr.f32.mxu0 0.0
  %428 = vmatmul.mubr.f32.gmra.mrb[0].mxu0 %v291
  %v429 = vpop.f32.mrb[0].mxu0
  %v430 = vadd.f32 0.0, %v429
  %v431 = vpop.f32.mrb[0].mxu0
  %432 = vmatprep.mubr.f32.mxu0 0.0
  %433 = vmatmul.mubr.f32.gmra.mrb[0].mxu0 %v294
  %v434 = vpop.f32.mrb[0].mxu0
  %v435 = vadd.f32 0.0, %v434
  %v436 = vpop.f32.mrb[0].mxu0
  %437 = vmatprep.mubr.f32.mxu0 0.0
  %438 = vmatmul.mubr.f32.gmra.mrb[0].mxu0 %v297
  %v439 = vpop.f32.mrb[0].mxu0
  %v440 = vadd.f32 0.0, %v439
  %v441 = vpop.f32.mrb[0].mxu0
  %442 = vmatprep.mubr.f32.mxu0 0.0
  %443 = vmatmul.mubr.f32.gmra.mrb[0].mxu0 %v300
  %v444 = vpop.f32.mrb[0].mxu0
  %v445 = vadd.f32 0.0, %v444
  %v446 = vpop.f32.mrb[0].mxu0
  %447 = vmatprep.mubr.f32.mxu0 0.0
  %448 = vmatmul.mubr.f32.gmra.mrb[0].mxu0 %v303
  %v449 = vpop.f32.mrb[0].mxu0
  %v450 = vadd.f32 0.0, %v449
  %v451 = vpop.f32.mrb[0].mxu0
  %452 = vdwg.mxu0
  %v453 = vlaneseq
  %v454 = vand.u32 %v453, 127
  %vm455 = vcmp.ge.s32.totalorder %v454, 1
  %vm456 = vcmp.le.s32.totalorder %v454, 8
  %vm457 = vmand %vm455, %vm456
  %v458 = vsel %vm457, %v375, -inf
  %v459 = vsel %vm457, %v380, -inf
  %v460 = vsel %vm457, %v385, -inf
  %v461 = vsel %vm457, %v390, -inf
  %v462 = vsel %vm457, %v395, -inf
  %v463 = vsel %vm457, %v400, -inf
  %v464 = vsel %vm457, %v405, -inf
  %v465 = vsel %vm457, %v410, -inf
  %v466 = vsel %vm457, %v415, -inf
  %v467 = vsel %vm457, %v420, -inf
  %v468 = vsel %vm457, %v425, -inf
  %v469 = vsel %vm457, %v430, -inf
  %v470 = vsel %vm457, %v435, -inf
  %v471 = vsel %vm457, %v440, -inf
  %v472 = vsel %vm457, %v445, -inf
  %v473 = vsel %vm457, %v450, -inf
  %474 = vmax.xlane.f32.xlu0 %v458
  %v475 = vpop.xlane.xlu0 %474
  %476 = vmax.xlane.f32.xlu0 %v459
  %v477 = vpop.xlane.xlu0 %476
  %478 = vmax.xlane.f32.xlu0 %v460
  %v479 = vpop.xlane.xlu0 %478
  %480 = vmax.xlane.f32.xlu0 %v461
  %v481 = vpop.xlane.xlu0 %480
  %482 = vmax.xlane.f32.xlu0 %v462
  %v483 = vpop.xlane.xlu0 %482
  %484 = vmax.xlane.f32.xlu0 %v463
  %v485 = vpop.xlane.xlu0 %484
  %486 = vmax.xlane.f32.xlu0 %v464
  %v487 = vpop.xlane.xlu0 %486
  %488 = vmax.xlane.f32.xlu0 %v465
  %v489 = vpop.xlane.xlu0 %488
  %490 = vmax.xlane.f32.xlu0 %v466
  %v491 = vpop.xlane.xlu0 %490
  %492 = vmax.xlane.f32.xlu0 %v467
  %v493 = vpop.xlane.xlu0 %492
  %494 = vmax.xlane.f32.xlu0 %v468
  %v495 = vpop.xlane.xlu0 %494
  %496 = vmax.xlane.f32.xlu0 %v469
  %v497 = vpop.xlane.xlu0 %496
  %498 = vmax.xlane.f32.xlu0 %v470
  %v499 = vpop.xlane.xlu0 %498
  %500 = vmax.xlane.f32.xlu0 %v471
  %v501 = vpop.xlane.xlu0 %500
  %502 = vmax.xlane.f32.xlu0 %v472
  %v503 = vpop.xlane.xlu0 %502
  %504 = vmax.xlane.f32.xlu0 %v473
  %v505 = vpop.xlane.xlu0 %504
  %v506 = vsub.f32 %v458, %v475
  %v507 = vsub.f32 %v459, %v477
  %v508 = vsub.f32 %v460, %v479
  %v509 = vsub.f32 %v461, %v481
  %v510 = vsub.f32 %v462, %v483
  %v511 = vsub.f32 %v463, %v485
  %v512 = vsub.f32 %v464, %v487
  %v513 = vsub.f32 %v465, %v489
  %v514 = vsub.f32 %v466, %v491
  %v515 = vsub.f32 %v467, %v493
  %v516 = vsub.f32 %v468, %v495
  %v517 = vsub.f32 %v469, %v497
  %v518 = vsub.f32 %v470, %v499
  %v519 = vsub.f32 %v471, %v501
  %v520 = vsub.f32 %v472, %v503
  %v521 = vsub.f32 %v473, %v505
  %v522 = vmul.f32 %v506, 1.442695
  %v523 = vpow.pop %v522
  %v524 = vmul.f32 %v507, 1.442695
  %v525 = vpow.pop %v524
  %v526 = vmul.f32 %v508, 1.442695
  %v527 = vpow.pop %v526
  %v528 = vmul.f32 %v509, 1.442695
  %v529 = vpow.pop %v528
  %v530 = vmul.f32 %v510, 1.442695
  %v531 = vpow.pop %v530
  %v532 = vmul.f32 %v511, 1.442695
  %v533 = vpow.pop %v532
  %v534 = vmul.f32 %v512, 1.442695
  %v535 = vpow.pop %v534
  %v536 = vmul.f32 %v513, 1.442695
  %v537 = vpow.pop %v536
  %v538 = vmul.f32 %v514, 1.442695
  %v539 = vpow.pop %v538
  %v540 = vmul.f32 %v515, 1.442695
  %v541 = vpow.pop %v540
  %v542 = vmul.f32 %v516, 1.442695
  %v543 = vpow.pop %v542
  %v544 = vmul.f32 %v517, 1.442695
  %v545 = vpow.pop %v544
  %v546 = vmul.f32 %v518, 1.442695
  %v547 = vpow.pop %v546
  %v548 = vmul.f32 %v519, 1.442695
  %v549 = vpow.pop %v548
  %v550 = vmul.f32 %v520, 1.442695
  %v551 = vpow.pop %v550
  %v552 = vmul.f32 %v521, 1.442695
  %v553 = vpow.pop %v552
  %554 = vadd.xlane.f32.xlu0 %v523
  %v555 = vpop.xlane.xlu0 %554
  %556 = vadd.xlane.f32.xlu0 %v525
  %v557 = vpop.xlane.xlu0 %556
  %558 = vadd.xlane.f32.xlu0 %v527
  %v559 = vpop.xlane.xlu0 %558
  %560 = vadd.xlane.f32.xlu0 %v529
  %v561 = vpop.xlane.xlu0 %560
  %562 = vadd.xlane.f32.xlu0 %v531
  %v563 = vpop.xlane.xlu0 %562
  %564 = vadd.xlane.f32.xlu0 %v533
  %v565 = vpop.xlane.xlu0 %564
  %566 = vadd.xlane.f32.xlu0 %v535
  %v567 = vpop.xlane.xlu0 %566
  %568 = vadd.xlane.f32.xlu0 %v537
  %v569 = vpop.xlane.xlu0 %568
  %570 = vadd.xlane.f32.xlu0 %v539
  %v571 = vpop.xlane.xlu0 %570
  %572 = vadd.xlane.f32.xlu0 %v541
  %v573 = vpop.xlane.xlu0 %572
  %574 = vadd.xlane.f32.xlu0 %v543
  %v575 = vpop.xlane.xlu0 %574
  %576 = vadd.xlane.f32.xlu0 %v545
  %v577 = vpop.xlane.xlu0 %576
  %578 = vadd.xlane.f32.xlu0 %v547
  %v579 = vpop.xlane.xlu0 %578
  %580 = vadd.xlane.f32.xlu0 %v549
  %v581 = vpop.xlane.xlu0 %580
  %582 = vadd.xlane.f32.xlu0 %v551
  %v583 = vpop.xlane.xlu0 %582
  %584 = vadd.xlane.f32.xlu0 %v553
  %v585 = vpop.xlane.xlu0 %584
  %v586 = vrcp.pop %v555
  %v587 = vrcp.pop %v557
  %v588 = vrcp.pop %v559
  %v589 = vrcp.pop %v561
  %v590 = vrcp.pop %v563
  %v591 = vrcp.pop %v565
  %v592 = vrcp.pop %v567
  %v593 = vrcp.pop %v569
  %v594 = vrcp.pop %v571
  %v595 = vrcp.pop %v573
  %v596 = vrcp.pop %v575
  %v597 = vrcp.pop %v577
  %v598 = vrcp.pop %v579
  %v599 = vrcp.pop %v581
  %v600 = vrcp.pop %v583
  %v601 = vrcp.pop %v585
  %v602 = vmul.f32 %v555, %v586
  %v603 = vmul.f32 %v557, %v587
  %v604 = vmul.f32 %v559, %v588
  %v605 = vmul.f32 %v561, %v589
  %v606 = vmul.f32 %v563, %v590
  %v607 = vmul.f32 %v565, %v591
  %v608 = vmul.f32 %v567, %v592
  %v609 = vmul.f32 %v569, %v593
  %v610 = vmul.f32 %v571, %v594
  %v611 = vmul.f32 %v573, %v595
  %v612 = vmul.f32 %v575, %v596
  %v613 = vmul.f32 %v577, %v597
  %v614 = vmul.f32 %v579, %v598
  %v615 = vmul.f32 %v581, %v599
  %v616 = vmul.f32 %v583, %v600
  %v617 = vmul.f32 %v585, %v601
  %v618 = vsub.f32 2.0, %v602
  %v619 = vsub.f32 2.0, %v603
  %v620 = vsub.f32 2.0, %v604
  %v621 = vsub.f32 2.0, %v605
  %v622 = vsub.f32 2.0, %v606
  %v623 = vsub.f32 2.0, %v607
  %v624 = vsub.f32 2.0, %v608
  %v625 = vsub.f32 2.0, %v609
  %v626 = vsub.f32 2.0, %v610
  %v627 = vsub.f32 2.0, %v611
  %v628 = vsub.f32 2.0, %v612
  %v629 = vsub.f32 2.0, %v613
  %v630 = vsub.f32 2.0, %v614
  %v631 = vsub.f32 2.0, %v615
  %v632 = vsub.f32 2.0, %v616
  %v633 = vsub.f32 2.0, %v617
  %v634 = vmul.f32 %v586, %v618
  %v635 = vmul.f32 %v587, %v619
  %v636 = vmul.f32 %v588, %v620
  %v637 = vmul.f32 %v589, %v621
  %v638 = vmul.f32 %v590, %v622
  %v639 = vmul.f32 %v591, %v623
  %v640 = vmul.f32 %v592, %v624
  %v641 = vmul.f32 %v593, %v625
  %v642 = vmul.f32 %v594, %v626
  %v643 = vmul.f32 %v595, %v627
  %v644 = vmul.f32 %v596, %v628
  %v645 = vmul.f32 %v597, %v629
  %v646 = vmul.f32 %v598, %v630
  %v647 = vmul.f32 %v599, %v631
  %v648 = vmul.f32 %v600, %v632
  %v649 = vmul.f32 %v601, %v633
  %v650 = vmul.f32 %v523, %v634
  %v651 = vmul.f32 %v525, %v635
  %v652 = vmul.f32 %v527, %v636
  %v653 = vmul.f32 %v529, %v637
  %v654 = vmul.f32 %v531, %v638
  %v655 = vmul.f32 %v533, %v639
  %v656 = vmul.f32 %v535, %v640
  %v657 = vmul.f32 %v537, %v641
  %v658 = vmul.f32 %v539, %v642
  %v659 = vmul.f32 %v541, %v643
  %v660 = vmul.f32 %v543, %v644
  %v661 = vmul.f32 %v545, %v645
  %v662 = vmul.f32 %v547, %v646
  %v663 = vmul.f32 %v549, %v647
  %v664 = vmul.f32 %v551, %v648
  %v665 = vmul.f32 %v553, %v649
  %v666 = vsel %vm457, %v650, %v375
  %v667 = vsel %vm457, %v651, %v380
  %v668 = vsel %vm457, %v652, %v385
  %v669 = vsel %vm457, %v653, %v390
  %v670 = vsel %vm457, %v654, %v395
  %v671 = vsel %vm457, %v655, %v400
  %v672 = vsel %vm457, %v656, %v405
  %v673 = vsel %vm457, %v657, %v410
  %v674 = vsel %vm457, %v658, %v415
  %v675 = vsel %vm457, %v659, %v420
  %v676 = vsel %vm457, %v660, %v425
  %v677 = vsel %vm457, %v661, %v430
  %v678 = vsel %vm457, %v662, %v435
  %v679 = vsel %vm457, %v663, %v440
  %v680 = vsel %vm457, %v664, %v445
  %v681 = vsel %vm457, %v665, %v450
  %682 = vst [vmem:[%s3] sm:$0xff] %v666
  %683 = vst [vmem:[%s3 + $0x8] sm:$0xff] %v667
  %684 = vst [vmem:[%s3 + $0x10] sm:$0xff] %v668
  %685 = vst [vmem:[%s3 + $0x18] sm:$0xff] %v669
  %686 = vst [vmem:[%s3 + $0x20] sm:$0xff] %v670
  %687 = vst [vmem:[%s3 + $0x28] sm:$0xff] %v671
  %688 = vst [vmem:[%s3 + $0x30] sm:$0xff] %v672
  %689 = vst [vmem:[%s3 + $0x38] sm:$0xff] %v673
  %690 = vst [vmem:[%s3 + $0x40] sm:$0xff] %v674
  %691 = vst [vmem:[%s3 + $0x48] sm:$0xff] %v675
  %692 = vst [vmem:[%s3 + $0x50] sm:$0xff] %v676
  %693 = vst [vmem:[%s3 + $0x58] sm:$0xff] %v677
  %694 = vst [vmem:[%s3 + $0x60] sm:$0xff] %v678
  %695 = vst [vmem:[%s3 + $0x68] sm:$0xff] %v679
  %696 = vst [vmem:[%s3 + $0x70] sm:$0xff] %v680
  %697 = vst [vmem:[%s3 + $0x78] sm:$0xff] %v681
  // Predicated region
  $region14: #{actor_critic_forward.1} parent=0 // pred_check
    _
  $region15: #{actor_critic_forward.1} parent=0 // pred_check_branch
    %699 = sbr.rel (0) target = $region17
  $region16: #{actor_critic_forward.1} parent=0 // pred_region
    _
  $region17: #{actor_critic_forward.1} parent=0 // pred_fallthru
    _
  // Predicated region
  $region18: #{actor_critic_forward.1} parent=0 // pred_check
    _
  $region19: #{actor_critic_forward.1} parent=0 // pred_check_branch
    %701 = sbr.rel (0) target = $region21
  $region20: #{actor_critic_forward.1} parent=0 // pred_region
    _
  $region21: #{actor_critic_forward.1} parent=0 // pred_fallthru
    _

</llo_original>
